<compile_context>
chip_gen: v5e
topology: v5e:2x2
jax: 0.10.0
libtpu: 0.0.40
codegen_flags: <defaults>
</compile_context>

<pallas_src>
import math

import jax
import jax.numpy as jnp
from jax.experimental import pallas as pl
from jax.experimental.pallas import tpu as pltpu

BN_EPS = 1e-5


def rpp_stats_kernel(x_ref, w_ref, b_ref, prob_ref, stat_ref):
    """Pass 1: conv + softmax + BN statistic sums for one image.

    x_ref:    (1, C, S) f32
    w_ref:    (P, C)    f32   1x1-conv weight
    b_ref:    (P, 1)    f32   conv bias
    prob_ref: (1, P, S) f32   out: softmax over parts
    stat_ref: (2, C, P) f32   out (resident accumulator across the grid):
              [0] = sum_{n,s} x * prob,   [1] = sum_{n,s} x^2 * prob^2
    """
    n = pl.program_id(0)

    @pl.when(n == 0)
    def _init():
        stat_ref[...] = jnp.zeros_like(stat_ref)

    x = x_ref[0]                                                     # (C, S)

    # 1x1 conv: (P, C) @ (C, S) on the MXU.
    logits = jnp.dot(w_ref[...], x, preferred_element_type=jnp.float32)
    logits = logits + b_ref[...]                                     # (P, S)

    # Softmax over the (small) part axis; divide moved to the EUP reciprocal.
    m = jnp.max(logits, axis=0, keepdims=True)                       # (1, S)
    e = jnp.exp(logits - m)                                          # (P, S)
    denom = jnp.sum(e, axis=0, keepdims=True)                        # (1, S)
    prob = e * pl.reciprocal(denom, approx=True)                     # (P, S)
    prob_ref[0] = prob

    # BN statistics via MXU contractions over S (replaces per-part XLU reductions):
    #   mu_sum[c, i]  += sum_s x[c, s]   * prob[i, s]
    #   ex2_sum[c, i] += sum_s x[c, s]^2 * prob[i, s]^2
    stat_ref[0] += jnp.dot(x, prob.T, preferred_element_type=jnp.float32)
    stat_ref[1] += jnp.dot(x * x, (prob * prob).T,
                           preferred_element_type=jnp.float32)


def rpp_pool_kernel(x_ref, prob_ref, scale_ref, shift_ref, o_ref):
    """Pass 2: folded-BN affine + ReLU + global average pool for one image.

    x_ref:     (1, C, S) f32
    prob_ref:  (1, P, S) f32
    scale_ref: (C, P)    f32   gamma * rsqrt(var + eps)
    shift_ref: (C, P)    f32   beta - mu * scale
    o_ref:     (1, C, P) f32   pooled part features
    """
    x = x_ref[0]                                                     # (C, S)
    prob = prob_ref[0]                                               # (P, S)
    scale = scale_ref[...]                                           # (C, P)
    shift = shift_ref[...]                                           # (C, P)

    _, s_len = x.shape
    num_parts = prob.shape[0]
    inv_s = 1.0 / s_len

    cols = []
    for i in range(num_parts):                                       # static, small
        y = x * prob[i:i + 1, :]                                     # (C, S)
        y_hat = y * scale[:, i:i + 1] + shift[:, i:i + 1]            # folded BN
        y_relu = jnp.maximum(y_hat, 0.0)
        cols.append(jnp.sum(y_relu, axis=1, keepdims=True) * inv_s)  # (C, 1)

    o_ref[0] = jnp.concatenate(cols, axis=1)                         # (C, P)


def _vmem_limit_bytes(num_f32_block_elems):
    """Scoped-VMEM request: double-buffered blocks + temporaries with headroom,
    floored at 32 MiB, capped at 56 MiB so it always fits v7x's 64 MiB VMEM."""
    need = 8 * num_f32_block_elems * 4
    return int(min(max(need, 32 << 20), 56 << 20))


def rpp_forward(x_nchw, conv_w, conv_b, gamma, beta):
    """x_nchw: (N, C, H, W) -> (N, C, P, 1), matching RPPLayer.forward."""
    N, C, H, W = x_nchw.shape
    P = conv_w.shape[0]
    S = H * W

    # Free reshape only -- no HBM transpose of the activations.
    x_ncs = x_nchw.reshape(N, C, S).astype(jnp.float32)
    w_pc = conv_w.reshape(P, C).astype(jnp.float32)
    b_p1 = conv_b.reshape(P, 1).astype(jnp.float32)

    # ---- pass 1: conv + softmax + BN statistic sums -------------------------
    vlim1 = _vmem_limit_bytes(C * S + P * C + P + P * S + 2 * C * P)
    prob, stat_sums = pl.pallas_call(
        rpp_stats_kernel,
        out_shape=(
            jax.ShapeDtypeStruct((N, P, S), jnp.float32),
            jax.ShapeDtypeStruct((2, C, P), jnp.float32),
        ),
        grid=(N,),
        in_specs=[
            pl.BlockSpec((1, C, S), lambda n: (n, 0, 0)),
            pl.BlockSpec((P, C), lambda n: (0, 0)),
            pl.BlockSpec((P, 1), lambda n: (0, 0)),
        ],
        out_specs=(
            pl.BlockSpec((1, P, S), lambda n: (n, 0, 0)),
            pl.BlockSpec((2, C, P), lambda n: (0, 0, 0)),
        ),
        compiler_params=pltpu.CompilerParams(
            dimension_semantics=("arbitrary",),   # stats accumulate across n
            vmem_limit_bytes=vlim1,
        ),
    )(x_ncs, w_pc, b_p1)

    # ---- fold BatchNorm (batch stats) into a per-(channel, part) affine -----
    cnt = jnp.float32(N * S)
    mu = stat_sums[0] / cnt                                          # (C, P)
    ex2 = stat_sums[1] / cnt                                         # (C, P)
    var = jnp.maximum(ex2 - mu * mu, 0.0)                            # cancellation guard
    scale = gamma.astype(jnp.float32)[:, None] * jax.lax.rsqrt(var + BN_EPS)
    shift = beta.astype(jnp.float32)[:, None] - mu * scale

    # ---- pass 2: affine + ReLU + global average pool -------------------------
    vlim2 = _vmem_limit_bytes(C * S + P * S + 3 * C * P)
    out_ncp = pl.pallas_call(
        rpp_pool_kernel,
        out_shape=jax.ShapeDtypeStruct((N, C, P), jnp.float32),
        grid=(N,),
        in_specs=[
            pl.BlockSpec((1, C, S), lambda n: (n, 0, 0)),
            pl.BlockSpec((1, P, S), lambda n: (n, 0, 0)),
            pl.BlockSpec((C, P), lambda n: (0, 0)),
            pl.BlockSpec((C, P), lambda n: (0, 0)),
        ],
        out_specs=pl.BlockSpec((1, C, P), lambda n: (n, 0, 0)),
        compiler_params=pltpu.CompilerParams(
            dimension_semantics=("parallel",),    # images independent -> 2 TCs on v7x
            vmem_limit_bytes=vlim2,
        ),
    )(x_ncs, prob, scale, shift)

    return out_ncp[..., None]                                        # (N, C, P, 1)


def rpp_reference(x_nchw, conv_w, conv_b, gamma, beta):
    """Pure-JAX reference implementing the same math (for validation)."""
    N, C, H, W = x_nchw.shape
    P = conv_w.shape[0]
    x = x_nchw.astype(jnp.float32)
    logits = jnp.einsum('nchw,pc->nphw', x, conv_w.astype(jnp.float32)) \
        + conv_b.astype(jnp.float32)[None, :, None, None]
    prob = jax.nn.softmax(logits, axis=1)
    outs = []
    for i in range(P):
        y = x * prob[:, i:i + 1, :, :]
        mu = jnp.mean(y, axis=(0, 2, 3), keepdims=True)
        var = jnp.mean((y - mu) ** 2, axis=(0, 2, 3), keepdims=True)
        y_hat = (y - mu) * jax.lax.rsqrt(var + BN_EPS)
        y_hat = y_hat * gamma[None, :, None, None] + beta[None, :, None, None]
        y_relu = jnp.maximum(y_hat, 0.0)
        outs.append(jnp.mean(y_relu, axis=(2, 3))[:, :, None, None])  # (N,C,1,1)
    return jnp.concatenate(outs, axis=2)                              # (N,C,P,1)


if __name__ == "__main__":
    # Small shapes consistent with the module: batch=2, backbone channels=32,
    # spatial 8x8 feature map, num_part=6.
    N, C, H, W = 2, 32, 8, 8
    P = 6

    key = jax.random.PRNGKey(0)
    kx, kw, kb = jax.random.split(key, 3)

    x = jax.random.normal(kx, (N, C, H, W), dtype=jnp.float32)

    # Conv2d(C, P, 1) weight: kaiming_normal_ fan_out/relu -> std = sqrt(2/P).
    conv_w = jax.random.normal(kw, (P, C), dtype=jnp.float32) * math.sqrt(2.0 / P)
    # Conv bias: PyTorch default uniform(-1/sqrt(C), 1/sqrt(C)).
    bound = 1.0 / math.sqrt(C)
    conv_b = jax.random.uniform(kb, (P,), minval=-bound, maxval=bound,
                                dtype=jnp.float32)
    # BatchNorm2d params after weights_init_kaiming: weight=1, bias=0.
    gamma = jnp.ones((C,), dtype=jnp.float32)
    beta = jnp.zeros((C,), dtype=jnp.float32)

    out = jax.jit(rpp_forward)(x, conv_w, conv_b, gamma, beta)
    out = jax.block_until_ready(out)

    ref = rpp_reference(x, conv_w, conv_b, gamma, beta)
    assert out.shape == (N, C, P, 1), out.shape
    max_err = float(jnp.max(jnp.abs(out - ref)))
    assert jnp.allclose(out, ref, rtol=1e-3, atol=1e-3), max_err

    print("KERNEL_OK")
</pallas_src>

<mosaic_0001>
module attributes {stable_mosaic.version = 11 : i64} {
  func.func @rpp_stats_kernel(%arg0: i32, %arg1: memref<1x32x64xf32, #tpu.memory_space<vmem>>, %arg2: memref<6x32xf32, #tpu.memory_space<vmem>>, %arg3: memref<6x1xf32, #tpu.memory_space<vmem>>, %arg4: memref<1x6x64xf32, #tpu.memory_space<vmem>>, %arg5: memref<2x32x6xf32, #tpu.memory_space<vmem>>) attributes {dimension_semantics = [#tpu.dimension_semantics<arbitrary>], iteration_bounds = array<i64: 2>, scalar_prefetch = 0 : i64, scratch_operands = 0 : i64, tpu.core_type = #tpu.core_type<tc>, window_params = [{transform_indices = @transform_0, window_bounds = array<i64: 1, 32, 64>}, {pipeline_mode = #tpu.pipeline_mode<synchronous>, transform_indices = @transform_1, window_bounds = array<i64: 6, 32>}, {pipeline_mode = #tpu.pipeline_mode<synchronous>, transform_indices = @transform_2, window_bounds = array<i64: 6, 1>}, {transform_indices = @transform_3, window_bounds = array<i64: 1, 6, 64>}, {pipeline_mode = #tpu.pipeline_mode<synchronous>, transform_indices = @transform_4, window_bounds = array<i64: 2, 32, 6>}]} {
    %c0_i32 = arith.constant 0 : i32
    %0 = arith.cmpi eq, %arg0, %c0_i32 : i32
    %1 = arith.extui %0 : i1 to i32
    %c0_i32_0 = arith.constant 0 : i32
    %2 = arith.cmpi ne, %1, %c0_i32_0 : i32
    scf.if %2 {
      %cst_25 = arith.constant 0.000000e+00 : f32
      %41 = vector.broadcast %cst_25 : f32 to vector<2x32x6xf32>
      %c0_26 = arith.constant 0 : index
      %c0_27 = arith.constant 0 : index
      %c0_28 = arith.constant 0 : index
      %42 = vector.load %arg5[%c0_26, %c0_27, %c0_28] : memref<2x32x6xf32, #tpu.memory_space<vmem>>, vector<2x32x6xf32>
      tpu.vector_store %arg5[%c0_26, %c0_27, %c0_28], %41 {strides = array<i32>} : memref<2x32x6xf32, #tpu.memory_space<vmem>>, vector<2x32x6xf32>,
    } else {
    }
    %c0 = arith.constant 0 : index
    %c0_1 = arith.constant 0 : index
    %c0_2 = arith.constant 0 : index
    %3 = vector.load %arg1[%c0, %c0_1, %c0_2] : memref<1x32x64xf32, #tpu.memory_space<vmem>>, vector<1x32x64xf32>
    %4 = vector.shape_cast %3 : vector<1x32x64xf32> to vector<32x64xf32>
    %c0_3 = arith.constant 0 : index
    %c0_4 = arith.constant 0 : index
    %5 = vector.load %arg2[%c0_3, %c0_4] : memref<6x32xf32, #tpu.memory_space<vmem>>, vector<6x32xf32>
    %cst = arith.constant dense<0.000000e+00> : vector<6x64xf32>
    %6 = tpu.matmul %5, %4, %cst {dimension_numbers = #tpu.dot_dimension_numbers<[1], [0], [0], [1], [0, 0, 1, 1], [], []>} : vector<6x32xf32>, vector<32x64xf32>, vector<6x64xf32> -> vector<6x64xf32>
    %c0_5 = arith.constant 0 : index
    %c0_6 = arith.constant 0 : index
    %7 = vector.load %arg3[%c0_5, %c0_6] : memref<6x1xf32, #tpu.memory_space<vmem>>, vector<6x1xf32>
    %8 = vector.broadcast %7 : vector<6x1xf32> to vector<6x64xf32>
    %9 = arith.addf %6, %8 : vector<6x64xf32>
    %cst_7 = arith.constant dense<0xFF800000> : vector<64xf32>
    %10 = vector.multi_reduction <maximumf>, %9, %cst_7 [0] : vector<6x64xf32> to vector<64xf32>
    %11 = vector.shape_cast %10 : vector<64xf32> to vector<1x64xf32>
    %12 = vector.broadcast %11 : vector<1x64xf32> to vector<6x64xf32>
    %13 = arith.subf %9, %12 : vector<6x64xf32>
    %14 = math.exp %13 : vector<6x64xf32>
    %cst_8 = arith.constant dense<0.000000e+00> : vector<64xf32>
    %15 = vector.multi_reduction <add>, %14, %cst_8 [0] : vector<6x64xf32> to vector<64xf32>
    %16 = vector.shape_cast %15 : vector<64xf32> to vector<1x64xf32>
    %17 = tpu.reciprocal %16 {approx = true} : vector<1x64xf32> -> vector<1x64xf32>
    %18 = vector.broadcast %17 : vector<1x64xf32> to vector<6x64xf32>
    %19 = arith.mulf %14, %18 : vector<6x64xf32>
    %c0_9 = arith.constant 0 : index
    %c0_10 = arith.constant 0 : index
    %c0_11 = arith.constant 0 : index
    %20 = vector.load %arg4[%c0_9, %c0_10, %c0_11] : memref<1x6x64xf32, #tpu.memory_space<vmem>>, vector<1x6x64xf32>
    %21 = vector.shape_cast %20 : vector<1x6x64xf32> to vector<6x64xf32>
    %22 = vector.shape_cast %19 : vector<6x64xf32> to vector<1x6x64xf32>
    tpu.vector_store %arg4[%c0_9, %c0_10, %c0_11], %22 {strides = array<i32>} : memref<1x6x64xf32, #tpu.memory_space<vmem>>, vector<1x6x64xf32>,
    %c0_12 = arith.constant 0 : index
    %c0_13 = arith.constant 0 : index
    %c0_14 = arith.constant 0 : index
    %23 = vector.load %arg5[%c0_12, %c0_13, %c0_14] : memref<2x32x6xf32, #tpu.memory_space<vmem>>, vector<1x32x6xf32>
    %24 = vector.shape_cast %23 : vector<1x32x6xf32> to vector<32x6xf32>
    %25 = tpu.transpose %19, [1, 0] : vector<6x64xf32> -> vector<64x6xf32>
    %cst_15 = arith.constant dense<0.000000e+00> : vector<32x6xf32>
    %26 = tpu.matmul %4, %25, %cst_15 {dimension_numbers = #tpu.dot_dimension_numbers<[1], [0], [0], [1], [0, 0, 1, 1], [], []>} : vector<32x64xf32>, vector<64x6xf32>, vector<32x6xf32> -> vector<32x6xf32>
    %27 = arith.addf %24, %26 : vector<32x6xf32>
    %c0_16 = arith.constant 0 : index
    %c0_17 = arith.constant 0 : index
    %c0_18 = arith.constant 0 : index
    %28 = vector.load %arg5[%c0_16, %c0_17, %c0_18] : memref<2x32x6xf32, #tpu.memory_space<vmem>>, vector<1x32x6xf32>
    %29 = vector.shape_cast %28 : vector<1x32x6xf32> to vector<32x6xf32>
    %30 = vector.shape_cast %27 : vector<32x6xf32> to vector<1x32x6xf32>
    tpu.vector_store %arg5[%c0_16, %c0_17, %c0_18], %30 {strides = array<i32>} : memref<2x32x6xf32, #tpu.memory_space<vmem>>, vector<1x32x6xf32>,
    %c1 = arith.constant 1 : index
    %c0_19 = arith.constant 0 : index
    %c0_20 = arith.constant 0 : index
    %31 = vector.load %arg5[%c1, %c0_19, %c0_20] : memref<2x32x6xf32, #tpu.memory_space<vmem>>, vector<1x32x6xf32>
    %32 = vector.shape_cast %31 : vector<1x32x6xf32> to vector<32x6xf32>
    %33 = arith.mulf %4, %4 : vector<32x64xf32>
    %34 = arith.mulf %19, %19 : vector<6x64xf32>
    %35 = tpu.transpose %34, [1, 0] : vector<6x64xf32> -> vector<64x6xf32>
    %cst_21 = arith.constant dense<0.000000e+00> : vector<32x6xf32>
    %36 = tpu.matmul %33, %35, %cst_21 {dimension_numbers = #tpu.dot_dimension_numbers<[1], [0], [0], [1], [0, 0, 1, 1], [], []>} : vector<32x64xf32>, vector<64x6xf32>, vector<32x6xf32> -> vector<32x6xf32>
    %37 = arith.addf %32, %36 : vector<32x6xf32>
    %c1_22 = arith.constant 1 : index
    %c0_23 = arith.constant 0 : index
    %c0_24 = arith.constant 0 : index
    %38 = vector.load %arg5[%c1_22, %c0_23, %c0_24] : memref<2x32x6xf32, #tpu.memory_space<vmem>>, vector<1x32x6xf32>
    %39 = vector.shape_cast %38 : vector<1x32x6xf32> to vector<32x6xf32>
    %40 = vector.shape_cast %37 : vector<32x6xf32> to vector<1x32x6xf32>
    tpu.vector_store %arg5[%c1_22, %c0_23, %c0_24], %40 {strides = array<i32>} : memref<2x32x6xf32, #tpu.memory_space<vmem>>, vector<1x32x6xf32>,
    return
  }
  func.func @transform_0(%arg0: i32) -> (i32, i32, i32) {
    %c0_i32 = arith.constant 0 : i32
    %c0_i32_0 = arith.constant 0 : i32
    %c0_i32_1 = arith.constant 0 : i32
    return %arg0, %c0_i32, %c0_i32_0 : i32, i32, i32
  }
  func.func @transform_1(%arg0: i32) -> (i32, i32) {
    %c0_i32 = arith.constant 0 : i32
    %c0_i32_0 = arith.constant 0 : i32
    %c0_i32_1 = arith.constant 0 : i32
    return %c0_i32, %c0_i32_0 : i32, i32
  }
  func.func @transform_2(%arg0: i32) -> (i32, i32) {
    %c0_i32 = arith.constant 0 : i32
    %c0_i32_0 = arith.constant 0 : i32
    %c0_i32_1 = arith.constant 0 : i32
    return %c0_i32, %c0_i32_0 : i32, i32
  }
  func.func @transform_3(%arg0: i32) -> (i32, i32, i32) {
    %c0_i32 = arith.constant 0 : i32
    %c0_i32_0 = arith.constant 0 : i32
    %c0_i32_1 = arith.constant 0 : i32
    return %arg0, %c0_i32, %c0_i32_0 : i32, i32, i32
  }
  func.func @transform_4(%arg0: i32) -> (i32, i32, i32) {
    %c0_i32 = arith.constant 0 : i32
    %c0_i32_0 = arith.constant 0 : i32
    %c0_i32_1 = arith.constant 0 : i32
    %c0_i32_2 = arith.constant 0 : i32
    return %c0_i32, %c0_i32_0, %c0_i32_1 : i32, i32, i32
  }
}

module attributes {stable_mosaic.version = 11 : i64} {
  func.func @rpp_pool_kernel(%arg0: i32, %arg1: memref<1x32x64xf32, #tpu.memory_space<vmem>>, %arg2: memref<1x6x64xf32, #tpu.memory_space<vmem>>, %arg3: memref<32x6xf32, #tpu.memory_space<vmem>>, %arg4: memref<32x6xf32, #tpu.memory_space<vmem>>, %arg5: memref<1x32x6xf32, #tpu.memory_space<vmem>>) attributes {dimension_semantics = [#tpu.dimension_semantics<parallel>], iteration_bounds = array<i64: 2>, scalar_prefetch = 0 : i64, scratch_operands = 0 : i64, tpu.core_type = #tpu.core_type<tc>, window_params = [{transform_indices = @transform_0, window_bounds = array<i64: 1, 32, 64>}, {transform_indices = @transform_1, window_bounds = array<i64: 1, 6, 64>}, {pipeline_mode = #tpu.pipeline_mode<synchronous>, transform_indices = @transform_2, window_bounds = array<i64: 32, 6>}, {pipeline_mode = #tpu.pipeline_mode<synchronous>, transform_indices = @transform_3, window_bounds = array<i64: 32, 6>}, {transform_indices = @transform_4, window_bounds = array<i64: 1, 32, 6>}]} {
    %c0 = arith.constant 0 : index
    %c0_0 = arith.constant 0 : index
    %c0_1 = arith.constant 0 : index
    %0 = vector.load %arg1[%c0, %c0_0, %c0_1] : memref<1x32x64xf32, #tpu.memory_space<vmem>>, vector<1x32x64xf32>
    %1 = vector.shape_cast %0 : vector<1x32x64xf32> to vector<32x64xf32>
    %c0_2 = arith.constant 0 : index
    %c0_3 = arith.constant 0 : index
    %c0_4 = arith.constant 0 : index
    %2 = vector.load %arg2[%c0_2, %c0_3, %c0_4] : memref<1x6x64xf32, #tpu.memory_space<vmem>>, vector<1x6x64xf32>
    %3 = vector.shape_cast %2 : vector<1x6x64xf32> to vector<6x64xf32>
    %c0_5 = arith.constant 0 : index
    %c0_6 = arith.constant 0 : index
    %4 = vector.load %arg3[%c0_5, %c0_6] : memref<32x6xf32, #tpu.memory_space<vmem>>, vector<32x6xf32>
    %c0_7 = arith.constant 0 : index
    %c0_8 = arith.constant 0 : index
    %5 = vector.load %arg4[%c0_7, %c0_8] : memref<32x6xf32, #tpu.memory_space<vmem>>, vector<32x6xf32>
    %6 = vector.extract_strided_slice %3 {offsets = [0, 0], sizes = [1, 64], strides = [1, 1]} : vector<6x64xf32> to vector<1x64xf32>
    %7 = vector.broadcast %6 : vector<1x64xf32> to vector<32x64xf32>
    %8 = arith.mulf %1, %7 : vector<32x64xf32>
    %9 = vector.extract_strided_slice %4 {offsets = [0, 0], sizes = [32, 1], strides = [1, 1]} : vector<32x6xf32> to vector<32x1xf32>
    %10 = vector.broadcast %9 : vector<32x1xf32> to vector<32x64xf32>
    %11 = arith.mulf %8, %10 : vector<32x64xf32>
    %12 = vector.extract_strided_slice %5 {offsets = [0, 0], sizes = [32, 1], strides = [1, 1]} : vector<32x6xf32> to vector<32x1xf32>
    %13 = vector.broadcast %12 : vector<32x1xf32> to vector<32x64xf32>
    %14 = arith.addf %11, %13 : vector<32x64xf32>
    %cst = arith.constant 0.000000e+00 : f32
    %15 = vector.broadcast %cst : f32 to vector<32x64xf32>
    %16 = arith.maximumf %14, %15 : vector<32x64xf32>
    %cst_9 = arith.constant dense<0.000000e+00> : vector<32xf32>
    %17 = vector.multi_reduction <add>, %16, %cst_9 [1] : vector<32x64xf32> to vector<32xf32>
    %18 = vector.shape_cast %17 : vector<32xf32> to vector<32x1xf32>
    %cst_10 = arith.constant 1.562500e-02 : f32
    %19 = vector.broadcast %cst_10 : f32 to vector<32x1xf32>
    %20 = arith.mulf %18, %19 : vector<32x1xf32>
    %21 = vector.extract_strided_slice %3 {offsets = [1, 0], sizes = [1, 64], strides = [1, 1]} : vector<6x64xf32> to vector<1x64xf32>
    %22 = vector.broadcast %21 : vector<1x64xf32> to vector<32x64xf32>
    %23 = arith.mulf %1, %22 : vector<32x64xf32>
    %24 = vector.extract_strided_slice %4 {offsets = [0, 1], sizes = [32, 1], strides = [1, 1]} : vector<32x6xf32> to vector<32x1xf32>
    %25 = vector.broadcast %24 : vector<32x1xf32> to vector<32x64xf32>
    %26 = arith.mulf %23, %25 : vector<32x64xf32>
    %27 = vector.extract_strided_slice %5 {offsets = [0, 1], sizes = [32, 1], strides = [1, 1]} : vector<32x6xf32> to vector<32x1xf32>
    %28 = vector.broadcast %27 : vector<32x1xf32> to vector<32x64xf32>
    %29 = arith.addf %26, %28 : vector<32x64xf32>
    %cst_11 = arith.constant 0.000000e+00 : f32
    %30 = vector.broadcast %cst_11 : f32 to vector<32x64xf32>
    %31 = arith.maximumf %29, %30 : vector<32x64xf32>
    %cst_12 = arith.constant dense<0.000000e+00> : vector<32xf32>
    %32 = vector.multi_reduction <add>, %31, %cst_12 [1] : vector<32x64xf32> to vector<32xf32>
    %33 = vector.shape_cast %32 : vector<32xf32> to vector<32x1xf32>
    %cst_13 = arith.constant 1.562500e-02 : f32
    %34 = vector.broadcast %cst_13 : f32 to vector<32x1xf32>
    %35 = arith.mulf %33, %34 : vector<32x1xf32>
    %36 = vector.extract_strided_slice %3 {offsets = [2, 0], sizes = [1, 64], strides = [1, 1]} : vector<6x64xf32> to vector<1x64xf32>
    %37 = vector.broadcast %36 : vector<1x64xf32> to vector<32x64xf32>
    %38 = arith.mulf %1, %37 : vector<32x64xf32>
    %39 = vector.extract_strided_slice %4 {offsets = [0, 2], sizes = [32, 1], strides = [1, 1]} : vector<32x6xf32> to vector<32x1xf32>
    %40 = vector.broadcast %39 : vector<32x1xf32> to vector<32x64xf32>
    %41 = arith.mulf %38, %40 : vector<32x64xf32>
    %42 = vector.extract_strided_slice %5 {offsets = [0, 2], sizes = [32, 1], strides = [1, 1]} : vector<32x6xf32> to vector<32x1xf32>
    %43 = vector.broadcast %42 : vector<32x1xf32> to vector<32x64xf32>
    %44 = arith.addf %41, %43 : vector<32x64xf32>
    %cst_14 = arith.constant 0.000000e+00 : f32
    %45 = vector.broadcast %cst_14 : f32 to vector<32x64xf32>
    %46 = arith.maximumf %44, %45 : vector<32x64xf32>
    %cst_15 = arith.constant dense<0.000000e+00> : vector<32xf32>
    %47 = vector.multi_reduction <add>, %46, %cst_15 [1] : vector<32x64xf32> to vector<32xf32>
    %48 = vector.shape_cast %47 : vector<32xf32> to vector<32x1xf32>
    %cst_16 = arith.constant 1.562500e-02 : f32
    %49 = vector.broadcast %cst_16 : f32 to vector<32x1xf32>
    %50 = arith.mulf %48, %49 : vector<32x1xf32>
    %51 = vector.extract_strided_slice %3 {offsets = [3, 0], sizes = [1, 64], strides = [1, 1]} : vector<6x64xf32> to vector<1x64xf32>
    %52 = vector.broadcast %51 : vector<1x64xf32> to vector<32x64xf32>
    %53 = arith.mulf %1, %52 : vector<32x64xf32>
    %54 = vector.extract_strided_slice %4 {offsets = [0, 3], sizes = [32, 1], strides = [1, 1]} : vector<32x6xf32> to vector<32x1xf32>
    %55 = vector.broadcast %54 : vector<32x1xf32> to vector<32x64xf32>
    %56 = arith.mulf %53, %55 : vector<32x64xf32>
    %57 = vector.extract_strided_slice %5 {offsets = [0, 3], sizes = [32, 1], strides = [1, 1]} : vector<32x6xf32> to vector<32x1xf32>
    %58 = vector.broadcast %57 : vector<32x1xf32> to vector<32x64xf32>
    %59 = arith.addf %56, %58 : vector<32x64xf32>
    %cst_17 = arith.constant 0.000000e+00 : f32
    %60 = vector.broadcast %cst_17 : f32 to vector<32x64xf32>
    %61 = arith.maximumf %59, %60 : vector<32x64xf32>
    %cst_18 = arith.constant dense<0.000000e+00> : vector<32xf32>
    %62 = vector.multi_reduction <add>, %61, %cst_18 [1] : vector<32x64xf32> to vector<32xf32>
    %63 = vector.shape_cast %62 : vector<32xf32> to vector<32x1xf32>
    %cst_19 = arith.constant 1.562500e-02 : f32
    %64 = vector.broadcast %cst_19 : f32 to vector<32x1xf32>
    %65 = arith.mulf %63, %64 : vector<32x1xf32>
    %66 = vector.extract_strided_slice %3 {offsets = [4, 0], sizes = [1, 64], strides = [1, 1]} : vector<6x64xf32> to vector<1x64xf32>
    %67 = vector.broadcast %66 : vector<1x64xf32> to vector<32x64xf32>
    %68 = arith.mulf %1, %67 : vector<32x64xf32>
    %69 = vector.extract_strided_slice %4 {offsets = [0, 4], sizes = [32, 1], strides = [1, 1]} : vector<32x6xf32> to vector<32x1xf32>
    %70 = vector.broadcast %69 : vector<32x1xf32> to vector<32x64xf32>
    %71 = arith.mulf %68, %70 : vector<32x64xf32>
    %72 = vector.extract_strided_slice %5 {offsets = [0, 4], sizes = [32, 1], strides = [1, 1]} : vector<32x6xf32> to vector<32x1xf32>
    %73 = vector.broadcast %72 : vector<32x1xf32> to vector<32x64xf32>
    %74 = arith.addf %71, %73 : vector<32x64xf32>
    %cst_20 = arith.constant 0.000000e+00 : f32
    %75 = vector.broadcast %cst_20 : f32 to vector<32x64xf32>
    %76 = arith.maximumf %74, %75 : vector<32x64xf32>
    %cst_21 = arith.constant dense<0.000000e+00> : vector<32xf32>
    %77 = vector.multi_reduction <add>, %76, %cst_21 [1] : vector<32x64xf32> to vector<32xf32>
    %78 = vector.shape_cast %77 : vector<32xf32> to vector<32x1xf32>
    %cst_22 = arith.constant 1.562500e-02 : f32
    %79 = vector.broadcast %cst_22 : f32 to vector<32x1xf32>
    %80 = arith.mulf %78, %79 : vector<32x1xf32>
    %81 = vector.extract_strided_slice %3 {offsets = [5, 0], sizes = [1, 64], strides = [1, 1]} : vector<6x64xf32> to vector<1x64xf32>
    %82 = vector.broadcast %81 : vector<1x64xf32> to vector<32x64xf32>
    %83 = arith.mulf %1, %82 : vector<32x64xf32>
    %84 = vector.extract_strided_slice %4 {offsets = [0, 5], sizes = [32, 1], strides = [1, 1]} : vector<32x6xf32> to vector<32x1xf32>
    %85 = vector.broadcast %84 : vector<32x1xf32> to vector<32x64xf32>
    %86 = arith.mulf %83, %85 : vector<32x64xf32>
    %87 = vector.extract_strided_slice %5 {offsets = [0, 5], sizes = [32, 1], strides = [1, 1]} : vector<32x6xf32> to vector<32x1xf32>
    %88 = vector.broadcast %87 : vector<32x1xf32> to vector<32x64xf32>
    %89 = arith.addf %86, %88 : vector<32x64xf32>
    %cst_23 = arith.constant 0.000000e+00 : f32
    %90 = vector.broadcast %cst_23 : f32 to vector<32x64xf32>
    %91 = arith.maximumf %89, %90 : vector<32x64xf32>
    %cst_24 = arith.constant dense<0.000000e+00> : vector<32xf32>
    %92 = vector.multi_reduction <add>, %91, %cst_24 [1] : vector<32x64xf32> to vector<32xf32>
    %93 = vector.shape_cast %92 : vector<32xf32> to vector<32x1xf32>
    %cst_25 = arith.constant 1.562500e-02 : f32
    %94 = vector.broadcast %cst_25 : f32 to vector<32x1xf32>
    %95 = arith.mulf %93, %94 : vector<32x1xf32>
    %96 = tpu.concatenate %20, %35, %50, %65, %80, %95 in 1 : vector<32x1xf32>, vector<32x1xf32>, vector<32x1xf32>, vector<32x1xf32>, vector<32x1xf32>, vector<32x1xf32> -> vector<32x6xf32>
    %c0_26 = arith.constant 0 : index
    %c0_27 = arith.constant 0 : index
    %c0_28 = arith.constant 0 : index
    %97 = vector.load %arg5[%c0_26, %c0_27, %c0_28] : memref<1x32x6xf32, #tpu.memory_space<vmem>>, vector<1x32x6xf32>
    %98 = vector.shape_cast %97 : vector<1x32x6xf32> to vector<32x6xf32>
    %99 = vector.shape_cast %96 : vector<32x6xf32> to vector<1x32x6xf32>
    tpu.vector_store %arg5[%c0_26, %c0_27, %c0_28], %99 {strides = array<i32>} : memref<1x32x6xf32, #tpu.memory_space<vmem>>, vector<1x32x6xf32>,
    return
  }
  func.func @transform_0(%arg0: i32) -> (i32, i32, i32) {
    %c0_i32 = arith.constant 0 : i32
    %c0_i32_0 = arith.constant 0 : i32
    %c0_i32_1 = arith.constant 0 : i32
    return %arg0, %c0_i32, %c0_i32_0 : i32, i32, i32
  }
  func.func @transform_1(%arg0: i32) -> (i32, i32, i32) {
    %c0_i32 = arith.constant 0 : i32
    %c0_i32_0 = arith.constant 0 : i32
    %c0_i32_1 = arith.constant 0 : i32
    return %arg0, %c0_i32, %c0_i32_0 : i32, i32, i32
  }
  func.func @transform_2(%arg0: i32) -> (i32, i32) {
    %c0_i32 = arith.constant 0 : i32
    %c0_i32_0 = arith.constant 0 : i32
    %c0_i32_1 = arith.constant 0 : i32
    return %c0_i32, %c0_i32_0 : i32, i32
  }
  func.func @transform_3(%arg0: i32) -> (i32, i32) {
    %c0_i32 = arith.constant 0 : i32
    %c0_i32_0 = arith.constant 0 : i32
    %c0_i32_1 = arith.constant 0 : i32
    return %c0_i32, %c0_i32_0 : i32, i32
  }
  func.func @transform_4(%arg0: i32) -> (i32, i32, i32) {
    %c0_i32 = arith.constant 0 : i32
    %c0_i32_0 = arith.constant 0 : i32
    %c0_i32_1 = arith.constant 0 : i32
    return %arg0, %c0_i32, %c0_i32_0 : i32, i32, i32
  }
}

</mosaic_0001>

<llo_original>
// kernel: rpp_forward.3
$region0: #{rpp_forward.3}
  #allocation0 [shape = 'u32[]', space=smem, size = 0x4, offset = 0x4, fixed_abs, tag = 'smem constant byte address 0x4 - core index']
  #allocation1 [shape = 'u32[72,128]{1,0:T(1,128)}', space=vmem, size = 0x9000, scoped, tag = 'internal scratch']
  %s0 = inlined_call_operand.vmem [shape: f32[2,32,64], index: 0, kind: input, shape index: {}]
  %s1 = inlined_call_operand.vmem [shape: f32[2,6,64], index: 1, kind: input, shape index: {}]
  %s2 = inlined_call_operand.vmem [shape: f32[32,6], index: 2, kind: input, shape index: {}]
  %s3 = inlined_call_operand.vmem [shape: f32[32,6], index: 3, kind: input, shape index: {}]
  %s4 = inlined_call_operand.vmem [shape: f32[2,32,6], index: 4, kind: output, shape index: {}]
  %s5 = sld [smem:[#allocation0]]
  $region49: #{rpp_forward.3} parent=0
    _
  %s7 = ssub.s32 1, %s5
  %s8 = scalar_select 0, %s7, %s5
  loop: start=0, step=1, limit=4
  $region2: #{rpp_forward.3} parent=0 // loop_pre_header
    _
  $region3: #{rpp_forward.3} parent=0 // loop_header
    %s10 = sphi 0, %s14
    %p11 = scmp.ge.s32.totalorder %s10, 4
    %s20 = sphi 0, %s22
    %s23 = sphi 0, %s20
    %s24 = sphi 0, %s23
    %s40 = sphi 0, %s24
    %s46 = sphi 0, %s48
    %s49 = sphi 0, %s46
    %s50 = sphi 0, %s49
    %s66 = sphi 0, %s50
    %s70 = sphi 0, %s70
    %s72 = sphi 0, %s70
    %s73 = sphi 0, %s72
    %s87 = sphi 0, %s73
    %s91 = sphi 0, %s91
    %s93 = sphi 0, %s91
    %s94 = sphi 0, %s93
    %s108 = sphi 0, %s94
    %s114 = sphi 0, %s116
    %s117 = sphi 0, %s114
    %s118 = sphi 0, %s117
    %s134 = sphi 0, %s118
  $region4: #{rpp_forward.3} parent=0 // loop_header_branch
    %13 = sbr.rel (%p11) target = $region8
  $region5: #{rpp_forward.3} parent=0 // loop_body
    %s15 = ssub.s32 %s10, 1
    %s16 = ssub.s32 %s10, 2
    %s17 = sadd.s32 %s10, 1
    %s18 = ssub.s32 %s10, %s17
    %p19 = scmp.eq.s32.totalorder %s18, 0
    %s21 = sadd.s32 %s20, 1
    %s22 = scalar_select %p19, %s20, %s21
    %p25 = pneg %p19
    %p26 = scmp.eq.s32.totalorder %s10, 1
    %p27 = por %p25, %p26
    %p28 = scmp.ne.s32.totalorder %s20, %s23
    %p29 = scmp.eq.s32.totalorder %s10, 0
    %p30 = por %p28, %p29
    %p31 = scmp.ne.s32.totalorder %s20, %s23
    %p32 = scmp.eq.s32.totalorder %s15, 1
    %p33 = por %p31, %p32
    %p34 = scmp.ne.s32.totalorder %s23, %s24
    %p35 = scmp.eq.s32.totalorder %s15, 0
    %p36 = por %p34, %p35
    %p37 = scmp.ne.s32.totalorder %s23, %s24
    %p38 = scmp.eq.s32.totalorder %s16, 1
    %p39 = por %p37, %p38
    %p41 = scmp.ne.s32.totalorder %s24, %s40
    %p42 = scmp.eq.s32.totalorder %s16, 0
    %p43 = por %p41, %p42
    %s44 = ssub.s32 %s10, %s17
    %p45 = scmp.eq.s32.totalorder %s44, 0
    %s47 = sadd.s32 %s46, 1
    %s48 = scalar_select %p45, %s46, %s47
    %p51 = pneg %p45
    %p52 = scmp.eq.s32.totalorder %s10, 1
    %p53 = por %p51, %p52
    %p54 = scmp.ne.s32.totalorder %s46, %s49
    %p55 = scmp.eq.s32.totalorder %s10, 0
    %p56 = por %p54, %p55
    %p57 = scmp.ne.s32.totalorder %s46, %s49
    %p58 = scmp.eq.s32.totalorder %s15, 1
    %p59 = por %p57, %p58
    %p60 = scmp.ne.s32.totalorder %s49, %s50
    %p61 = scmp.eq.s32.totalorder %s15, 0
    %p62 = por %p60, %p61
    %p63 = scmp.ne.s32.totalorder %s49, %s50
    %p64 = scmp.eq.s32.totalorder %s16, 1
    %p65 = por %p63, %p64
    %p67 = scmp.ne.s32.totalorder %s50, %s66
    %p68 = scmp.eq.s32.totalorder %s16, 0
    %p69 = por %p67, %p68
    %s71 = sadd.s32 %s70, 1
    %p74 = scmp.eq.s32.totalorder %s10, 1
    %p75 = scmp.ne.s32.totalorder %s70, %s72
    %p76 = scmp.eq.s32.totalorder %s10, 0
    %p77 = por %p75, %p76
    %p78 = scmp.ne.s32.totalorder %s70, %s72
    %p79 = scmp.eq.s32.totalorder %s15, 1
    %p80 = por %p78, %p79
    %p81 = scmp.ne.s32.totalorder %s72, %s73
    %p82 = scmp.eq.s32.totalorder %s15, 0
    %p83 = por %p81, %p82
    %p84 = scmp.ne.s32.totalorder %s72, %s73
    %p85 = scmp.eq.s32.totalorder %s16, 1
    %p86 = por %p84, %p85
    %p88 = scmp.ne.s32.totalorder %s73, %s87
    %p89 = scmp.eq.s32.totalorder %s16, 0
    %p90 = por %p88, %p89
    %s92 = sadd.s32 %s91, 1
    %p95 = scmp.eq.s32.totalorder %s10, 1
    %p96 = scmp.ne.s32.totalorder %s91, %s93
    %p97 = scmp.eq.s32.totalorder %s10, 0
    %p98 = por %p96, %p97
    %p99 = scmp.ne.s32.totalorder %s91, %s93
    %p100 = scmp.eq.s32.totalorder %s15, 1
    %p101 = por %p99, %p100
    %p102 = scmp.ne.s32.totalorder %s93, %s94
    %p103 = scmp.eq.s32.totalorder %s15, 0
    %p104 = por %p102, %p103
    %p105 = scmp.ne.s32.totalorder %s93, %s94
    %p106 = scmp.eq.s32.totalorder %s16, 1
    %p107 = por %p105, %p106
    %p109 = scmp.ne.s32.totalorder %s94, %s108
    %p110 = scmp.eq.s32.totalorder %s16, 0
    %p111 = por %p109, %p110
    %s112 = ssub.s32 %s10, %s17
    %p113 = scmp.eq.s32.totalorder %s112, 0
    %s115 = sadd.s32 %s114, 1
    %s116 = scalar_select %p113, %s114, %s115
    %p119 = pneg %p113
    %p120 = scmp.eq.s32.totalorder %s10, 1
    %p121 = por %p119, %p120
    %p122 = scmp.ne.s32.totalorder %s114, %s117
    %p123 = scmp.eq.s32.totalorder %s10, 0
    %p124 = por %p122, %p123
    %p125 = scmp.ne.s32.totalorder %s114, %s117
    %p126 = scmp.eq.s32.totalorder %s15, 1
    %p127 = por %p125, %p126
    %p128 = scmp.ne.s32.totalorder %s117, %s118
    %p129 = scmp.eq.s32.totalorder %s15, 0
    %p130 = por %p128, %p129
    %p131 = scmp.ne.s32.totalorder %s117, %s118
    %p132 = scmp.eq.s32.totalorder %s16, 1
    %p133 = por %p131, %p132
    %p135 = scmp.ne.s32.totalorder %s118, %s134
    %p136 = scmp.eq.s32.totalorder %s16, 0
    %p137 = por %p135, %p136
    %p138 = scmp.le.s32.totalorder 1, %s10
    %p139 = scmp.lt.s32.totalorder %s10, 3
    %p140 = pnand %p138, %p139
    %p141 = pneg %p140
    // Predicated region
    $region9: #{rpp_forward.3} parent=5 // pred_check
      _
    $region10: #{rpp_forward.3} parent=5 // pred_check_branch
      %143 = sbr.rel (%p140) target = $region12
    $region11: #{rpp_forward.3} parent=5 // pred_region
      %s144 = ssub.s32 %s10, 1
      // Predicated region
      $region13: #{rpp_forward.3} parent=11 // pred_check
        %p145 = pneg %p83
      $region14: #{rpp_forward.3} parent=11 // pred_check_branch
        %147 = sbr.rel (%p145) target = $region16
      $region15: #{rpp_forward.3} parent=11 // pred_region
        _
      $region16: #{rpp_forward.3} parent=11 // pred_fallthru
        _
      // Predicated region
      $region17: #{rpp_forward.3} parent=11 // pred_check
        %p148 = pneg %p104
      $region18: #{rpp_forward.3} parent=11 // pred_check_branch
        %150 = sbr.rel (%p148) target = $region20
      $region19: #{rpp_forward.3} parent=11 // pred_region
        _
      $region20: #{rpp_forward.3} parent=11 // pred_fallthru
        _
    $region12: #{rpp_forward.3} parent=5 // pred_fallthru
      _
    %p151 = scmp.lt.s32.totalorder %s10, 2
    // Predicated region
    $region21: #{rpp_forward.3} parent=5 // pred_check
      %p152 = pneg %p151
    $region22: #{rpp_forward.3} parent=5 // pred_check_branch
      %154 = sbr.rel (%p152) target = $region24
    $region23: #{rpp_forward.3} parent=5 // pred_region
      // Predicated region
      $region25: #{rpp_forward.3} parent=23 // pred_check
        %p155 = pneg %p30
      $region26: #{rpp_forward.3} parent=23 // pred_check_branch
        %157 = sbr.rel (%p155) target = $region28
      $region27: #{rpp_forward.3} parent=23 // pred_region
        %p158 = scmp.lt.s32.totalorder %s10, 1
        %s159 = scalar_select %p158, %s10, 1
        %s160 = smul.addr %s159, 4
        %s161 = smul.addr %s160, 8
        %s162 = scalar_lea.vmem %s0, %s161
      $region28: #{rpp_forward.3} parent=23 // pred_fallthru
        _
      // Predicated region
      $region29: #{rpp_forward.3} parent=23 // pred_check
        %p163 = pneg %p56
      $region30: #{rpp_forward.3} parent=23 // pred_check_branch
        %165 = sbr.rel (%p163) target = $region32
      $region31: #{rpp_forward.3} parent=23 // pred_region
        %p166 = scmp.lt.s32.totalorder %s10, 1
        %s167 = scalar_select %p166, %s10, 1
        %s168 = smul.addr %s167, 8
        %s169 = scalar_lea.vmem %s1, %s168
      $region32: #{rpp_forward.3} parent=23 // pred_fallthru
        _
    $region24: #{rpp_forward.3} parent=5 // pred_fallthru
      _
    %p170 = scmp.le.s32.totalorder 1, %s10
    %p171 = scmp.lt.s32.totalorder %s10, 3
    %p172 = pnand %p170, %p171
    %p173 = pneg %p172
    // Predicated region
    $region33: #{rpp_forward.3} parent=5 // pred_check
      _
    $region34: #{rpp_forward.3} parent=5 // pred_check_branch
      %175 = sbr.rel (%p172) target = $region36
    $region35: #{rpp_forward.3} parent=5 // pred_region
      %s176 = ssub.s32 %s10, 1
      %p177 = scmp.lt.s32.totalorder %s15, 1
      %s178 = scalar_select %p177, %s15, 1
      %s179 = smul.addr %s178, 4
      %s180 = smul.addr %s179, 8
      %s181 = scalar_lea.vmem %s0, %s180
      %p182 = pneg %p36
      %p183 = pneg %p33
      %p184 = scmp.lt.s32.totalorder %s15, 1
      %s185 = scalar_select %p184, %s15, 1
      %s186 = smul.addr %s185, 8
      %s187 = scalar_lea.vmem %s1, %s186
      %p188 = pneg %p62
      %p189 = pneg %p59
      %p190 = pneg %p83
      %p191 = pneg %p80
      %p192 = pneg %p104
      %p193 = pneg %p101
      %p194 = pneg %p130
      %p195 = pneg %p127
      %p196 = scmp.lt.s32.totalorder %s15, 1
      %s197 = scalar_select %p196, %s15, 1
      %s198 = smul.addr %s197, 4
      %s199 = smul.addr %s198, 8
      %s200 = scalar_lea.vmem %s4, %s199
      %p201 = scmp.lt.s32.totalorder %s15, 1
      %s202 = scalar_select %p201, %s15, 1
      %s203 = smul.addr %s202, 4
      %s204 = smul.addr %s203, 8
      %s205 = scalar_lea.vmem %s0, %s204
      %p206 = scmp.lt.s32.totalorder %s15, 1
      %s207 = scalar_select %p206, %s15, 1
      %s208 = smul.addr %s207, 8
      %s209 = scalar_lea.vmem %s1, %s208
      %p210 = scmp.lt.s32.totalorder %s15, 1
      %s211 = scalar_select %p210, %s15, 1
      %s212 = smul.addr %s211, 4
      %s213 = smul.addr %s212, 8
      %s214 = scalar_lea.vmem %s4, %s213
      %v215 = vld [vmem:[%s205] sm:$0xff]
      %v216 = vld [vmem:[%s205 + $0x8] sm:$0xff]
      %v217 = vld [vmem:[%s205 + $0x10] sm:$0xff]
      %v218 = vld [vmem:[%s205 + $0x18] sm:$0xff]
      %v219 = vld [vmem:[%s209] sm:$0x3f]
      %v220 = vld [vmem:[%s2] sm:$0xff]
      %v221 = vld [vmem:[%s2 + $0x8] sm:$0xff]
      %v222 = vld [vmem:[%s2 + $0x10] sm:$0xff]
      %v223 = vld [vmem:[%s2 + $0x18] sm:$0xff]
      %v224 = vld [vmem:[%s3] sm:$0xff]
      %v225 = vld [vmem:[%s3 + $0x8] sm:$0xff]
      %v226 = vld [vmem:[%s3 + $0x10] sm:$0xff]
      %v227 = vld [vmem:[%s3 + $0x18] sm:$0xff]
      %v228 = vperm.slane %v219, 0
      %v229 = vmul.f32 %v215, %v228
      %v230 = vmul.f32 %v216, %v228
      %v231 = vmul.f32 %v217, %v228
      %v232 = vmul.f32 %v218, %v228
      %234 = vset.pattern.permute.xlu0 0
      %235 = vperm.xlu0 %234, %v220
      %v236 = vpop.permute.xlu0 %235
      %239 = vset.pattern.permute.xlu0 0
      %240 = vperm.xlu0 %239, %v221
      %v241 = vpop.permute.xlu0 %240
      %244 = vset.pattern.permute.xlu0 0
      %245 = vperm.xlu0 %244, %v222
      %v246 = vpop.permute.xlu0 %245
      %249 = vset.pattern.permute.xlu0 0
      %250 = vperm.xlu0 %249, %v223
      %v251 = vpop.permute.xlu0 %250
      %v253 = vmul.f32 %v229, %v236
      %v254 = vmul.f32 %v230, %v241
      %v255 = vmul.f32 %v231, %v246
      %v256 = vmul.f32 %v232, %v251
      %258 = vset.pattern.permute.xlu0 0
      %259 = vperm.xlu0 %258, %v224
      %v260 = vpop.permute.xlu0 %259
      %263 = vset.pattern.permute.xlu0 0
      %264 = vperm.xlu0 %263, %v225
      %v265 = vpop.permute.xlu0 %264
      %268 = vset.pattern.permute.xlu0 0
      %269 = vperm.xlu0 %268, %v226
      %v270 = vpop.permute.xlu0 %269
      %273 = vset.pattern.permute.xlu0 0
      %274 = vperm.xlu0 %273, %v227
      %v275 = vpop.permute.xlu0 %274
      %v277 = vadd.f32 %v253, %v260
      %v278 = vadd.f32 %v254, %v265
      %v279 = vadd.f32 %v255, %v270
      %v280 = vadd.f32 %v256, %v275
      %v281 = vmax.f32 %v277, 0.0
      %v282 = vmax.f32 %v278, 0.0
      %v283 = vmax.f32 %v279, 0.0
      %v284 = vmax.f32 %v280, 0.0
      %vm285 = vcmask 523264
      %v286 = vsel %vm285, %v281, 0.0
      %287 = vadd.xlane.f32.xlu0 %v286
      %v288 = vpop.xlane.xlu0 %287
      %v289 = vsel %vm285, %v282, 0.0
      %290 = vadd.xlane.f32.xlu0 %v289
      %v291 = vpop.xlane.xlu0 %290
      %v292 = vsel %vm285, %v283, 0.0
      %293 = vadd.xlane.f32.xlu0 %v292
      %v294 = vpop.xlane.xlu0 %293
      %v295 = vsel %vm285, %v284, 0.0
      %296 = vadd.xlane.f32.xlu0 %v295
      %v297 = vpop.xlane.xlu0 %296
      %v298 = vmul.f32 %v288, 0.015625
      %v299 = vmul.f32 %v291, 0.015625
      %v300 = vmul.f32 %v294, 0.015625
      %v301 = vmul.f32 %v297, 0.015625
      %v302 = vperm.slane %v219, 1
      %v303 = vmul.f32 %v215, %v302
      %v304 = vmul.f32 %v216, %v302
      %v305 = vmul.f32 %v217, %v302
      %v306 = vmul.f32 %v218, %v302
      %307 = vset.pattern.permute.xlu0 1
      %308 = vperm.xlu0 %307, %v220
      %v309 = vpop.permute.xlu0 %308
      %311 = vset.pattern.permute.xlu0 1
      %312 = vperm.xlu0 %311, %v221
      %v313 = vpop.permute.xlu0 %312
      %315 = vset.pattern.permute.xlu0 1
      %316 = vperm.xlu0 %315, %v222
      %v317 = vpop.permute.xlu0 %316
      %319 = vset.pattern.permute.xlu0 1
      %320 = vperm.xlu0 %319, %v223
      %v321 = vpop.permute.xlu0 %320
      %v323 = vmul.f32 %v303, %v309
      %v324 = vmul.f32 %v304, %v313
      %v325 = vmul.f32 %v305, %v317
      %v326 = vmul.f32 %v306, %v321
      %327 = vset.pattern.permute.xlu0 1
      %328 = vperm.xlu0 %327, %v224
      %v329 = vpop.permute.xlu0 %328
      %331 = vset.pattern.permute.xlu0 1
      %332 = vperm.xlu0 %331, %v225
      %v333 = vpop.permute.xlu0 %332
      %335 = vset.pattern.permute.xlu0 1
      %336 = vperm.xlu0 %335, %v226
      %v337 = vpop.permute.xlu0 %336
      %339 = vset.pattern.permute.xlu0 1
      %340 = vperm.xlu0 %339, %v227
      %v341 = vpop.permute.xlu0 %340
      %v343 = vadd.f32 %v323, %v329
      %v344 = vadd.f32 %v324, %v333
      %v345 = vadd.f32 %v325, %v337
      %v346 = vadd.f32 %v326, %v341
      %v347 = vmax.f32 %v343, 0.0
      %v348 = vmax.f32 %v344, 0.0
      %v349 = vmax.f32 %v345, 0.0
      %v350 = vmax.f32 %v346, 0.0
      %v351 = vsel %vm285, %v347, 0.0
      %352 = vadd.xlane.f32.xlu0 %v351
      %v353 = vpop.xlane.xlu0 %352
      %v354 = vsel %vm285, %v348, 0.0
      %355 = vadd.xlane.f32.xlu0 %v354
      %v356 = vpop.xlane.xlu0 %355
      %v357 = vsel %vm285, %v349, 0.0
      %358 = vadd.xlane.f32.xlu0 %v357
      %v359 = vpop.xlane.xlu0 %358
      %v360 = vsel %vm285, %v350, 0.0
      %361 = vadd.xlane.f32.xlu0 %v360
      %v362 = vpop.xlane.xlu0 %361
      %v363 = vmul.f32 %v353, 0.015625
      %v364 = vmul.f32 %v356, 0.015625
      %v365 = vmul.f32 %v359, 0.015625
      %v366 = vmul.f32 %v362, 0.015625
      %v367 = vperm.slane %v219, 2
      %v368 = vmul.f32 %v215, %v367
      %v369 = vmul.f32 %v216, %v367
      %v370 = vmul.f32 %v217, %v367
      %v371 = vmul.f32 %v218, %v367
      %372 = vset.pattern.permute.xlu0 2
      %373 = vperm.xlu0 %372, %v220
      %v374 = vpop.permute.xlu0 %373
      %376 = vset.pattern.permute.xlu0 2
      %377 = vperm.xlu0 %376, %v221
      %v378 = vpop.permute.xlu0 %377
      %380 = vset.pattern.permute.xlu0 2
      %381 = vperm.xlu0 %380, %v222
      %v382 = vpop.permute.xlu0 %381
      %384 = vset.pattern.permute.xlu0 2
      %385 = vperm.xlu0 %384, %v223
      %v386 = vpop.permute.xlu0 %385
      %v388 = vmul.f32 %v368, %v374
      %v389 = vmul.f32 %v369, %v378
      %v390 = vmul.f32 %v370, %v382
      %v391 = vmul.f32 %v371, %v386
      %392 = vset.pattern.permute.xlu0 2
      %393 = vperm.xlu0 %392, %v224
      %v394 = vpop.permute.xlu0 %393
      %396 = vset.pattern.permute.xlu0 2
      %397 = vperm.xlu0 %396, %v225
      %v398 = vpop.permute.xlu0 %397
      %400 = vset.pattern.permute.xlu0 2
      %401 = vperm.xlu0 %400, %v226
      %v402 = vpop.permute.xlu0 %401
      %404 = vset.pattern.permute.xlu0 2
      %405 = vperm.xlu0 %404, %v227
      %v406 = vpop.permute.xlu0 %405
      %v408 = vadd.f32 %v388, %v394
      %v409 = vadd.f32 %v389, %v398
      %v410 = vadd.f32 %v390, %v402
      %v411 = vadd.f32 %v391, %v406
      %v412 = vmax.f32 %v408, 0.0
      %v413 = vmax.f32 %v409, 0.0
      %v414 = vmax.f32 %v410, 0.0
      %v415 = vmax.f32 %v411, 0.0
      %v416 = vsel %vm285, %v412, 0.0
      %417 = vadd.xlane.f32.xlu0 %v416
      %v418 = vpop.xlane.xlu0 %417
      %v419 = vsel %vm285, %v413, 0.0
      %420 = vadd.xlane.f32.xlu0 %v419
      %v421 = vpop.xlane.xlu0 %420
      %v422 = vsel %vm285, %v414, 0.0
      %423 = vadd.xlane.f32.xlu0 %v422
      %v424 = vpop.xlane.xlu0 %423
      %v425 = vsel %vm285, %v415, 0.0
      %426 = vadd.xlane.f32.xlu0 %v425
      %v427 = vpop.xlane.xlu0 %426
      %v428 = vmul.f32 %v418, 0.015625
      %v429 = vmul.f32 %v421, 0.015625
      %v430 = vmul.f32 %v424, 0.015625
      %v431 = vmul.f32 %v427, 0.015625
      %v432 = vperm.slane %v219, 3
      %v433 = vmul.f32 %v215, %v432
      %v434 = vmul.f32 %v216, %v432
      %v435 = vmul.f32 %v217, %v432
      %v436 = vmul.f32 %v218, %v432
      %437 = vset.pattern.permute.xlu0 3
      %438 = vperm.xlu0 %437, %v220
      %v439 = vpop.permute.xlu0 %438
      %441 = vset.pattern.permute.xlu0 3
      %442 = vperm.xlu0 %441, %v221
      %v443 = vpop.permute.xlu0 %442
      %445 = vset.pattern.permute.xlu0 3
      %446 = vperm.xlu0 %445, %v222
      %v447 = vpop.permute.xlu0 %446
      %449 = vset.pattern.permute.xlu0 3
      %450 = vperm.xlu0 %449, %v223
      %v451 = vpop.permute.xlu0 %450
      %v453 = vmul.f32 %v433, %v439
      %v454 = vmul.f32 %v434, %v443
      %v455 = vmul.f32 %v435, %v447
      %v456 = vmul.f32 %v436, %v451
      %457 = vset.pattern.permute.xlu0 3
      %458 = vperm.xlu0 %457, %v224
      %v459 = vpop.permute.xlu0 %458
      %461 = vset.pattern.permute.xlu0 3
      %462 = vperm.xlu0 %461, %v225
      %v463 = vpop.permute.xlu0 %462
      %465 = vset.pattern.permute.xlu0 3
      %466 = vperm.xlu0 %465, %v226
      %v467 = vpop.permute.xlu0 %466
      %469 = vset.pattern.permute.xlu0 3
      %470 = vperm.xlu0 %469, %v227
      %v471 = vpop.permute.xlu0 %470
      %v473 = vadd.f32 %v453, %v459
      %v474 = vadd.f32 %v454, %v463
      %v475 = vadd.f32 %v455, %v467
      %v476 = vadd.f32 %v456, %v471
      %v477 = vmax.f32 %v473, 0.0
      %v478 = vmax.f32 %v474, 0.0
      %v479 = vmax.f32 %v475, 0.0
      %v480 = vmax.f32 %v476, 0.0
      %v481 = vsel %vm285, %v477, 0.0
      %482 = vadd.xlane.f32.xlu0 %v481
      %v483 = vpop.xlane.xlu0 %482
      %v484 = vsel %vm285, %v478, 0.0
      %485 = vadd.xlane.f32.xlu0 %v484
      %v486 = vpop.xlane.xlu0 %485
      %v487 = vsel %vm285, %v479, 0.0
      %488 = vadd.xlane.f32.xlu0 %v487
      %v489 = vpop.xlane.xlu0 %488
      %v490 = vsel %vm285, %v480, 0.0
      %491 = vadd.xlane.f32.xlu0 %v490
      %v492 = vpop.xlane.xlu0 %491
      %v493 = vmul.f32 %v483, 0.015625
      %v494 = vmul.f32 %v486, 0.015625
      %v495 = vmul.f32 %v489, 0.015625
      %v496 = vmul.f32 %v492, 0.015625
      %v497 = vperm.slane %v219, 4
      %v498 = vmul.f32 %v215, %v497
      %v499 = vmul.f32 %v216, %v497
      %v500 = vmul.f32 %v217, %v497
      %v501 = vmul.f32 %v218, %v497
      %502 = vset.pattern.permute.xlu0 4
      %503 = vperm.xlu0 %502, %v220
      %v504 = vpop.permute.xlu0 %503
      %506 = vset.pattern.permute.xlu0 4
      %507 = vperm.xlu0 %506, %v221
      %v508 = vpop.permute.xlu0 %507
      %510 = vset.pattern.permute.xlu0 4
      %511 = vperm.xlu0 %510, %v222
      %v512 = vpop.permute.xlu0 %511
      %514 = vset.pattern.permute.xlu0 4
      %515 = vperm.xlu0 %514, %v223
      %v516 = vpop.permute.xlu0 %515
      %v518 = vmul.f32 %v498, %v504
      %v519 = vmul.f32 %v499, %v508
      %v520 = vmul.f32 %v500, %v512
      %v521 = vmul.f32 %v501, %v516
      %522 = vset.pattern.permute.xlu0 4
      %523 = vperm.xlu0 %522, %v224
      %v524 = vpop.permute.xlu0 %523
      %526 = vset.pattern.permute.xlu0 4
      %527 = vperm.xlu0 %526, %v225
      %v528 = vpop.permute.xlu0 %527
      %530 = vset.pattern.permute.xlu0 4
      %531 = vperm.xlu0 %530, %v226
      %v532 = vpop.permute.xlu0 %531
      %534 = vset.pattern.permute.xlu0 4
      %535 = vperm.xlu0 %534, %v227
      %v536 = vpop.permute.xlu0 %535
      %v538 = vadd.f32 %v518, %v524
      %v539 = vadd.f32 %v519, %v528
      %v540 = vadd.f32 %v520, %v532
      %v541 = vadd.f32 %v521, %v536
      %v542 = vmax.f32 %v538, 0.0
      %v543 = vmax.f32 %v539, 0.0
      %v544 = vmax.f32 %v540, 0.0
      %v545 = vmax.f32 %v541, 0.0
      %v546 = vsel %vm285, %v542, 0.0
      %547 = vadd.xlane.f32.xlu0 %v546
      %v548 = vpop.xlane.xlu0 %547
      %v549 = vsel %vm285, %v543, 0.0
      %550 = vadd.xlane.f32.xlu0 %v549
      %v551 = vpop.xlane.xlu0 %550
      %v552 = vsel %vm285, %v544, 0.0
      %553 = vadd.xlane.f32.xlu0 %v552
      %v554 = vpop.xlane.xlu0 %553
      %v555 = vsel %vm285, %v545, 0.0
      %556 = vadd.xlane.f32.xlu0 %v555
      %v557 = vpop.xlane.xlu0 %556
      %v558 = vmul.f32 %v548, 0.015625
      %v559 = vmul.f32 %v551, 0.015625
      %v560 = vmul.f32 %v554, 0.015625
      %v561 = vmul.f32 %v557, 0.015625
      %v562 = vperm.slane %v219, 5
      %v563 = vmul.f32 %v215, %v562
      %v564 = vmul.f32 %v216, %v562
      %v565 = vmul.f32 %v217, %v562
      %v566 = vmul.f32 %v218, %v562
      %567 = vset.pattern.permute.xlu0 5
      %568 = vperm.xlu0 %567, %v220
      %v569 = vpop.permute.xlu0 %568
      %571 = vset.pattern.permute.xlu0 5
      %572 = vperm.xlu0 %571, %v221
      %v573 = vpop.permute.xlu0 %572
      %575 = vset.pattern.permute.xlu0 5
      %576 = vperm.xlu0 %575, %v222
      %v577 = vpop.permute.xlu0 %576
      %579 = vset.pattern.permute.xlu0 5
      %580 = vperm.xlu0 %579, %v223
      %v581 = vpop.permute.xlu0 %580
      %v583 = vmul.f32 %v563, %v569
      %v584 = vmul.f32 %v564, %v573
      %v585 = vmul.f32 %v565, %v577
      %v586 = vmul.f32 %v566, %v581
      %587 = vset.pattern.permute.xlu0 5
      %588 = vperm.xlu0 %587, %v224
      %v589 = vpop.permute.xlu0 %588
      %591 = vset.pattern.permute.xlu0 5
      %592 = vperm.xlu0 %591, %v225
      %v593 = vpop.permute.xlu0 %592
      %595 = vset.pattern.permute.xlu0 5
      %596 = vperm.xlu0 %595, %v226
      %v597 = vpop.permute.xlu0 %596
      %599 = vset.pattern.permute.xlu0 5
      %600 = vperm.xlu0 %599, %v227
      %v601 = vpop.permute.xlu0 %600
      %v603 = vadd.f32 %v583, %v589
      %v604 = vadd.f32 %v584, %v593
      %v605 = vadd.f32 %v585, %v597
      %v606 = vadd.f32 %v586, %v601
      %v607 = vmax.f32 %v603, 0.0
      %v608 = vmax.f32 %v604, 0.0
      %v609 = vmax.f32 %v605, 0.0
      %v610 = vmax.f32 %v606, 0.0
      %v611 = vsel %vm285, %v607, 0.0
      %612 = vadd.xlane.f32.xlu0 %v611
      %v613 = vpop.xlane.xlu0 %612
      %v614 = vsel %vm285, %v608, 0.0
      %615 = vadd.xlane.f32.xlu0 %v614
      %v616 = vpop.xlane.xlu0 %615
      %v617 = vsel %vm285, %v609, 0.0
      %618 = vadd.xlane.f32.xlu0 %v617
      %v619 = vpop.xlane.xlu0 %618
      %v620 = vsel %vm285, %v610, 0.0
      %621 = vadd.xlane.f32.xlu0 %v620
      %v622 = vpop.xlane.xlu0 %621
      %v623 = vmul.f32 %v613, 0.015625
      %v624 = vmul.f32 %v616, 0.015625
      %v625 = vmul.f32 %v619, 0.015625
      %v626 = vmul.f32 %v622, 0.015625
      %vm627 = vcmask 7168
      %v628 = vsel %vm627, %v298, %v363
      %v629 = vsel %vm627, %v299, %v364
      %v630 = vsel %vm627, %v300, %v365
      %v631 = vsel %vm627, %v301, %v366
      %vm632 = vcmask 15360
      %v633 = vsel %vm632, %v628, %v428
      %v634 = vsel %vm632, %v629, %v429
      %v635 = vsel %vm632, %v630, %v430
      %v636 = vsel %vm632, %v631, %v431
      %vm637 = vcmask 23552
      %v638 = vsel %vm637, %v633, %v493
      %v639 = vsel %vm637, %v634, %v494
      %v640 = vsel %vm637, %v635, %v495
      %v641 = vsel %vm637, %v636, %v496
      %vm642 = vcmask 31744
      %v643 = vsel %vm642, %v638, %v558
      %v644 = vsel %vm642, %v639, %v559
      %v645 = vsel %vm642, %v640, %v560
      %v646 = vsel %vm642, %v641, %v561
      %vm647 = vcmask 39936
      %v648 = vsel %vm647, %v643, %v623
      %v649 = vsel %vm647, %v644, %v624
      %v650 = vsel %vm647, %v645, %v625
      %v651 = vsel %vm647, %v646, %v626
      %vm652 = vcmask 48128
      %653 = vst.msk [vmem:[%s214] sm:$0xff] %vm652, %v648
      %654 = vst.msk [vmem:[%s214 + $0x8] sm:$0xff] %vm652, %v649
      %655 = vst.msk [vmem:[%s214 + $0x10] sm:$0xff] %vm652, %v650
      %656 = vst.msk [vmem:[%s214 + $0x18] sm:$0xff] %vm652, %v651
      %p657 = scmp.lt.s32.totalorder %s15, 1
      %s658 = scalar_select %p657, %s15, 1
      %s659 = smul.addr %s658, 4
      %s660 = smul.addr %s659, 8
      %s661 = scalar_lea.vmem %s4, %s660
      // Predicated region
      $region37: #{rpp_forward.3} parent=35 // pred_check
        %p662 = pneg %p127
      $region38: #{rpp_forward.3} parent=35 // pred_check_branch
        %664 = sbr.rel (%p662) target = $region40
      $region39: #{rpp_forward.3} parent=35 // pred_region
        _
      $region40: #{rpp_forward.3} parent=35 // pred_fallthru
        _
    $region36: #{rpp_forward.3} parent=5 // pred_fallthru
      _
    %p665 = scmp.le.s32.totalorder 2, %s10
    // Predicated region
    $region41: #{rpp_forward.3} parent=5 // pred_check
      %p666 = pneg %p665
    $region42: #{rpp_forward.3} parent=5 // pred_check_branch
      %668 = sbr.rel (%p666) target = $region44
    $region43: #{rpp_forward.3} parent=5 // pred_region
      %s669 = ssub.s32 %s10, 2
      // Predicated region
      $region45: #{rpp_forward.3} parent=43 // pred_check
        %p670 = pneg %p133
      $region46: #{rpp_forward.3} parent=43 // pred_check_branch
        %672 = sbr.rel (%p670) target = $region48
      $region47: #{rpp_forward.3} parent=43 // pred_region
        %p673 = scmp.lt.s32.totalorder %s16, 1
        %s674 = scalar_select %p673, %s16, 1
        %s675 = smul.addr %s674, 4
        %s676 = smul.addr %s675, 8
        %s677 = scalar_lea.vmem %s4, %s676
      $region48: #{rpp_forward.3} parent=43 // pred_fallthru
        _
    $region44: #{rpp_forward.3} parent=5 // pred_fallthru
      _
  $region6: #{rpp_forward.3} parent=0 // loop_footer
    %s14 = sadd.s32 1, %s10
  $region7: #{rpp_forward.3} parent=0 // loop_footer_branch
    %9 = sbr.rel target = $region3
  $region8: #{rpp_forward.3} parent=0 // loop_exit
    _

// kernel: rpp_forward.2
$region0: #{rpp_forward.2}
  #allocation0 [shape = 'u32[]', space=smem, size = 0x4, offset = 0x4, fixed_abs, tag = 'smem constant byte address 0x4 - core index']
  #allocation1 [shape = 'u32[72,128]{1,0:T(1,128)}', space=vmem, size = 0x9000, scoped, tag = 'internal scratch']
  %s0 = inlined_call_operand.vmem [shape: f32[2,32,64], index: 0, kind: input, shape index: {}]
  %s1 = inlined_call_operand.vmem [shape: f32[6,32], index: 1, kind: input, shape index: {}]
  %s2 = inlined_call_operand.vmem [shape: f32[6,1], index: 2, kind: input, shape index: {}]
  %s3 = inlined_call_operand.vmem [shape: f32[2,6,64], index: 3, kind: output, shape index: {0}]
  %s4 = inlined_call_operand.vmem [shape: f32[2,32,6], index: 4, kind: output, shape index: {1}]
  %5 = xla_tuple %s3, %s4
  %s6 = sld [smem:[#allocation0]]
  $region57: #{rpp_forward.2} parent=0
    _
  %s8 = ssub.s32 1, %s6
  %s9 = scalar_select 0, %s8, %s6
  loop: start=0, step=1, limit=4
  $region2: #{rpp_forward.2} parent=0 // loop_pre_header
    _
  $region3: #{rpp_forward.2} parent=0 // loop_header
    %s11 = sphi 0, %s15
    %p12 = scmp.ge.s32.totalorder %s11, 4
    %s21 = sphi 0, %s23
    %s24 = sphi 0, %s21
    %s25 = sphi 0, %s24
    %s41 = sphi 0, %s25
    %s45 = sphi 0, %s45
    %s47 = sphi 0, %s45
    %s48 = sphi 0, %s47
    %s62 = sphi 0, %s48
    %s66 = sphi 0, %s66
    %s68 = sphi 0, %s66
    %s69 = sphi 0, %s68
    %s83 = sphi 0, %s69
    %s89 = sphi 0, %s91
    %s92 = sphi 0, %s89
    %s93 = sphi 0, %s92
    %s109 = sphi 0, %s93
    %s113 = sphi 0, %s113
    %s115 = sphi 0, %s113
    %s116 = sphi 0, %s115
    %s130 = sphi 0, %s116
  $region4: #{rpp_forward.2} parent=0 // loop_header_branch
    %14 = sbr.rel (%p12) target = $region8
  $region5: #{rpp_forward.2} parent=0 // loop_body
    %s16 = ssub.s32 %s11, 1
    %s17 = ssub.s32 %s11, 2
    %s18 = sadd.s32 %s11, 1
    %s19 = ssub.s32 %s11, %s18
    %p20 = scmp.eq.s32.totalorder %s19, 0
    %s22 = sadd.s32 %s21, 1
    %s23 = scalar_select %p20, %s21, %s22
    %p26 = pneg %p20
    %p27 = scmp.eq.s32.totalorder %s11, 1
    %p28 = por %p26, %p27
    %p29 = scmp.ne.s32.totalorder %s21, %s24
    %p30 = scmp.eq.s32.totalorder %s11, 0
    %p31 = por %p29, %p30
    %p32 = scmp.ne.s32.totalorder %s21, %s24
    %p33 = scmp.eq.s32.totalorder %s16, 1
    %p34 = por %p32, %p33
    %p35 = scmp.ne.s32.totalorder %s24, %s25
    %p36 = scmp.eq.s32.totalorder %s16, 0
    %p37 = por %p35, %p36
    %p38 = scmp.ne.s32.totalorder %s24, %s25
    %p39 = scmp.eq.s32.totalorder %s17, 1
    %p40 = por %p38, %p39
    %p42 = scmp.ne.s32.totalorder %s25, %s41
    %p43 = scmp.eq.s32.totalorder %s17, 0
    %p44 = por %p42, %p43
    %s46 = sadd.s32 %s45, 1
    %p49 = scmp.eq.s32.totalorder %s11, 1
    %p50 = scmp.ne.s32.totalorder %s45, %s47
    %p51 = scmp.eq.s32.totalorder %s11, 0
    %p52 = por %p50, %p51
    %p53 = scmp.ne.s32.totalorder %s45, %s47
    %p54 = scmp.eq.s32.totalorder %s16, 1
    %p55 = por %p53, %p54
    %p56 = scmp.ne.s32.totalorder %s47, %s48
    %p57 = scmp.eq.s32.totalorder %s16, 0
    %p58 = por %p56, %p57
    %p59 = scmp.ne.s32.totalorder %s47, %s48
    %p60 = scmp.eq.s32.totalorder %s17, 1
    %p61 = por %p59, %p60
    %p63 = scmp.ne.s32.totalorder %s48, %s62
    %p64 = scmp.eq.s32.totalorder %s17, 0
    %p65 = por %p63, %p64
    %s67 = sadd.s32 %s66, 1
    %p70 = scmp.eq.s32.totalorder %s11, 1
    %p71 = scmp.ne.s32.totalorder %s66, %s68
    %p72 = scmp.eq.s32.totalorder %s11, 0
    %p73 = por %p71, %p72
    %p74 = scmp.ne.s32.totalorder %s66, %s68
    %p75 = scmp.eq.s32.totalorder %s16, 1
    %p76 = por %p74, %p75
    %p77 = scmp.ne.s32.totalorder %s68, %s69
    %p78 = scmp.eq.s32.totalorder %s16, 0
    %p79 = por %p77, %p78
    %p80 = scmp.ne.s32.totalorder %s68, %s69
    %p81 = scmp.eq.s32.totalorder %s17, 1
    %p82 = por %p80, %p81
    %p84 = scmp.ne.s32.totalorder %s69, %s83
    %p85 = scmp.eq.s32.totalorder %s17, 0
    %p86 = por %p84, %p85
    %s87 = ssub.s32 %s11, %s18
    %p88 = scmp.eq.s32.totalorder %s87, 0
    %s90 = sadd.s32 %s89, 1
    %s91 = scalar_select %p88, %s89, %s90
    %p94 = pneg %p88
    %p95 = scmp.eq.s32.totalorder %s11, 1
    %p96 = por %p94, %p95
    %p97 = scmp.ne.s32.totalorder %s89, %s92
    %p98 = scmp.eq.s32.totalorder %s11, 0
    %p99 = por %p97, %p98
    %p100 = scmp.ne.s32.totalorder %s89, %s92
    %p101 = scmp.eq.s32.totalorder %s16, 1
    %p102 = por %p100, %p101
    %p103 = scmp.ne.s32.totalorder %s92, %s93
    %p104 = scmp.eq.s32.totalorder %s16, 0
    %p105 = por %p103, %p104
    %p106 = scmp.ne.s32.totalorder %s92, %s93
    %p107 = scmp.eq.s32.totalorder %s17, 1
    %p108 = por %p106, %p107
    %p110 = scmp.ne.s32.totalorder %s93, %s109
    %p111 = scmp.eq.s32.totalorder %s17, 0
    %p112 = por %p110, %p111
    %s114 = sadd.s32 %s113, 1
    %p117 = scmp.eq.s32.totalorder %s11, 1
    %p118 = scmp.ne.s32.totalorder %s113, %s115
    %p119 = scmp.eq.s32.totalorder %s11, 0
    %p120 = por %p118, %p119
    %p121 = scmp.ne.s32.totalorder %s113, %s115
    %p122 = scmp.eq.s32.totalorder %s16, 1
    %p123 = por %p121, %p122
    %p124 = scmp.ne.s32.totalorder %s115, %s116
    %p125 = scmp.eq.s32.totalorder %s16, 0
    %p126 = por %p124, %p125
    %p127 = scmp.ne.s32.totalorder %s115, %s116
    %p128 = scmp.eq.s32.totalorder %s17, 1
    %p129 = por %p127, %p128
    %p131 = scmp.ne.s32.totalorder %s116, %s130
    %p132 = scmp.eq.s32.totalorder %s17, 0
    %p133 = por %p131, %p132
    %p134 = scmp.le.s32.totalorder 1, %s11
    %p135 = scmp.lt.s32.totalorder %s11, 3
    %p136 = pnand %p134, %p135
    %p137 = pneg %p136
    // Predicated region
    $region9: #{rpp_forward.2} parent=5 // pred_check
      _
    $region10: #{rpp_forward.2} parent=5 // pred_check_branch
      %139 = sbr.rel (%p136) target = $region12
    $region11: #{rpp_forward.2} parent=5 // pred_region
      %s140 = ssub.s32 %s11, 1
      // Predicated region
      $region13: #{rpp_forward.2} parent=11 // pred_check
        %p141 = pneg %p58
      $region14: #{rpp_forward.2} parent=11 // pred_check_branch
        %143 = sbr.rel (%p141) target = $region16
      $region15: #{rpp_forward.2} parent=11 // pred_region
        _
      $region16: #{rpp_forward.2} parent=11 // pred_fallthru
        _
      // Predicated region
      $region17: #{rpp_forward.2} parent=11 // pred_check
        %p144 = pneg %p79
      $region18: #{rpp_forward.2} parent=11 // pred_check_branch
        %146 = sbr.rel (%p144) target = $region20
      $region19: #{rpp_forward.2} parent=11 // pred_region
        _
      $region20: #{rpp_forward.2} parent=11 // pred_fallthru
        _
    $region12: #{rpp_forward.2} parent=5 // pred_fallthru
      _
    %p147 = scmp.lt.s32.totalorder %s11, 2
    // Predicated region
    $region21: #{rpp_forward.2} parent=5 // pred_check
      %p148 = pneg %p147
    $region22: #{rpp_forward.2} parent=5 // pred_check_branch
      %150 = sbr.rel (%p148) target = $region24
    $region23: #{rpp_forward.2} parent=5 // pred_region
      // Predicated region
      $region25: #{rpp_forward.2} parent=23 // pred_check
        %p151 = pneg %p31
      $region26: #{rpp_forward.2} parent=23 // pred_check_branch
        %153 = sbr.rel (%p151) target = $region28
      $region27: #{rpp_forward.2} parent=23 // pred_region
        %p154 = scmp.lt.s32.totalorder %s11, 1
        %s155 = scalar_select %p154, %s11, 1
        %s156 = smul.addr %s155, 4
        %s157 = smul.addr %s156, 8
        %s158 = scalar_lea.vmem %s0, %s157
      $region28: #{rpp_forward.2} parent=23 // pred_fallthru
        _
    $region24: #{rpp_forward.2} parent=5 // pred_fallthru
      _
    %p159 = scmp.le.s32.totalorder 1, %s11
    %p160 = scmp.lt.s32.totalorder %s11, 3
    %p161 = pnand %p159, %p160
    %p162 = pneg %p161
    // Predicated region
    $region29: #{rpp_forward.2} parent=5 // pred_check
      _
    $region30: #{rpp_forward.2} parent=5 // pred_check_branch
      %164 = sbr.rel (%p161) target = $region32
    $region31: #{rpp_forward.2} parent=5 // pred_region
      %s165 = ssub.s32 %s11, 1
      %p166 = scmp.lt.s32.totalorder %s16, 1
      %s167 = scalar_select %p166, %s16, 1
      %s168 = smul.addr %s167, 4
      %s169 = smul.addr %s168, 8
      %s170 = scalar_lea.vmem %s0, %s169
      %p171 = pneg %p37
      %p172 = pneg %p34
      %p173 = pneg %p58
      %p174 = pneg %p55
      %p175 = pneg %p79
      %p176 = pneg %p76
      %p177 = pneg %p105
      %p178 = pneg %p102
      %p179 = scmp.lt.s32.totalorder %s16, 1
      %s180 = scalar_select %p179, %s16, 1
      %s181 = smul.addr %s180, 8
      %s182 = scalar_lea.vmem %s3, %s181
      %p183 = pneg %p126
      %p184 = pneg %p123
      %p185 = scmp.lt.s32.totalorder %s16, 1
      %s186 = scalar_select %p185, %s16, 1
      %s187 = smul.addr %s186, 4
      %s188 = smul.addr %s187, 8
      %s189 = scalar_lea.vmem %s0, %s188
      %p190 = scmp.lt.s32.totalorder %s16, 1
      %s191 = scalar_select %p190, %s16, 1
      %s192 = smul.addr %s191, 8
      %s193 = scalar_lea.vmem %s3, %s192
      %p194 = scmp.eq.s32.totalorder %s16, 0
      // Predicated region
      $region33: #{rpp_forward.2} parent=31 // pred_check
        %p195 = pneg %p194
      $region34: #{rpp_forward.2} parent=31 // pred_check_branch
        %197 = sbr.rel (%p195) target = $region36
      $region35: #{rpp_forward.2} parent=31 // pred_region
        %vm198 = vcmask 48128
        %199 = vst.msk [vmem:[%s4] sm:$0xff] %vm198, 0.0
        %200 = vst.msk [vmem:[%s4 + $0x8] sm:$0xff] %vm198, 0.0
        %201 = vst.msk [vmem:[%s4 + $0x10] sm:$0xff] %vm198, 0.0
        %202 = vst.msk [vmem:[%s4 + $0x18] sm:$0xff] %vm198, 0.0
        %203 = vst.msk [vmem:[%s4 + $0x20] sm:$0xff] %vm198, 0.0
        %204 = vst.msk [vmem:[%s4 + $0x28] sm:$0xff] %vm198, 0.0
        %205 = vst.msk [vmem:[%s4 + $0x30] sm:$0xff] %vm198, 0.0
        %206 = vst.msk [vmem:[%s4 + $0x38] sm:$0xff] %vm198, 0.0
      $region36: #{rpp_forward.2} parent=31 // pred_fallthru
        _
      %v207 = vld [vmem:[%s189] sm:$0xff]
      %v208 = vld [vmem:[%s189 + $0x8] sm:$0xff]
      %v209 = vld [vmem:[%s189 + $0x10] sm:$0xff]
      %v210 = vld [vmem:[%s189 + $0x18] sm:$0xff]
      %v211 = vld [vmem:[%s1] sm:$0x3f]
      %v212 = vld [vmem:[%s2] sm:$0x3f]
      %214 = vset.pattern.permute.xlu0 0
      %215 = vperm.xlu0 %214, %v212
      %v216 = vpop.permute.xlu0 %215
      %vm218 = vcmask 261120
      %v220 = vsel %vm218, %v211, 0
      %222 = vmatpush.msra.mxu0 0.0
      %223 = vmatpush.msra.mxu0 0.0
      %224 = vmatpush.msra.mxu0 0.0
      %225 = vmatpush.msra.mxu0 0.0
      %226 = vmatpush.msra.mxu0 0.0
      %227 = vmatpush.msra.mxu0 0.0
      %228 = vmatpush.msra.mxu0 0.0
      %229 = vmatpush.msra.mxu0 0.0
      %230 = vmatpush.msra.mxu0 0.0
      %231 = vmatpush.msra.mxu0 0.0
      %232 = vmatpush.msra.mxu0 0.0
      %233 = vmatpush.msra.mxu0 0.0
      %234 = vmatpush.msra.mxu0 %v210
      %235 = vmatpush.msra.mxu0 %v209
      %236 = vmatpush.msra.mxu0 %v208
      %237 = vmatpush.msra.mxu0 %v207
      %238 = vmatmul.f32.gmra.mxu0 %v220
      %v239 = vpop.f32.mrf.mxu0
      %v240 = vadd.f32 %v216, %v239
      %241 = vdwg.mxu0
      %vm242 = vcmask 521216
      %v243 = vsel %vm242, %v240, -inf
      %v244 = vrot.slane %v243, 4
      %v245 = vmax.f32 %v243, %v244
      %v246 = vrot.slane %v245, 2
      %v247 = vmax.f32 %v245, %v246
      %v248 = vrot.slane %v247, 1
      %v249 = vmax.f32 %v247, %v248
      %v250 = vsub.f32 %v240, %v249
      %v251 = vmul.f32 %v250, 1.442695
      %v252 = vpow.pop %v251
      %v253 = vsel %vm242, %v252, 0.0
      %v254 = vrot.slane %v253, 4
      %v255 = vadd.f32 %v253, %v254
      %v256 = vrot.slane %v255, 2
      %v257 = vadd.f32 %v255, %v256
      %v258 = vrot.slane %v257, 1
      %v259 = vadd.f32 %v257, %v258
      %v260 = vrcp.pop %v259
      %v261 = vmul.f32 %v252, %v260
      %262 = vst.msk [vmem:[%s193] sm:$0x3f] %vm242, %v261
      %v263 = vld [vmem:[%s4] sm:$0xff]
      %v264 = vld [vmem:[%s4 + $0x8] sm:$0xff]
      %v265 = vld [vmem:[%s4 + $0x10] sm:$0xff]
      %v266 = vld [vmem:[%s4 + $0x18] sm:$0xff]
      %vm267 = vcmask 523264
      %v269 = vsel %vm267, %v207, 0
      %v272 = vsel %vm267, %v208, 0
      %v275 = vsel %vm267, %v209, 0
      %v278 = vsel %vm267, %v210, 0
      %v281 = vsel %vm267, %v261, 0
      %283 = vmatpush.xpose.msra.mxu0 0.0
      %284 = vmatpush.xpose.msra.mxu0 0.0
      %285 = vmatpush.xpose.msra.mxu0 0.0
      %286 = vmatpush.xpose.msra.mxu0 0.0
      %287 = vmatpush.xpose.msra.mxu0 0.0
      %288 = vmatpush.xpose.msra.mxu0 0.0
      %289 = vmatpush.xpose.msra.mxu0 0.0
      %290 = vmatpush.xpose.msra.mxu0 0.0
      %291 = vmatpush.xpose.msra.mxu0 0.0
      %292 = vmatpush.xpose.msra.mxu0 0.0
      %293 = vmatpush.xpose.msra.mxu0 0.0
      %294 = vmatpush.xpose.msra.mxu0 0.0
      %295 = vmatpush.xpose.msra.mxu0 0.0
      %296 = vmatpush.xpose.msra.mxu0 0.0
      %297 = vmatpush.xpose.msra.mxu0 0.0
      %298 = vmatpush.xpose.msra.mxu0 %v281
      %299 = vmatmul.f32.gmra.mxu0 %v269
      %v300 = vpop.f32.mrf.mxu0
      %v301 = vadd.f32 0.0, %v300
      %302 = vmatmul.f32.gmra.mxu0 %v272
      %v303 = vpop.f32.mrf.mxu0
      %v304 = vadd.f32 0.0, %v303
      %305 = vmatmul.f32.gmra.mxu0 %v275
      %v306 = vpop.f32.mrf.mxu0
      %v307 = vadd.f32 0.0, %v306
      %308 = vmatmul.f32.gmra.mxu0 %v278
      %v309 = vpop.f32.mrf.mxu0
      %v310 = vadd.f32 0.0, %v309
      %311 = vdwg.mxu0
      %v312 = vadd.f32 %v263, %v301
      %v313 = vadd.f32 %v264, %v304
      %v314 = vadd.f32 %v265, %v307
      %v315 = vadd.f32 %v266, %v310
      %vm316 = vcmask 48128
      %317 = vst.msk [vmem:[%s4] sm:$0xff] %vm316, %v312
      %318 = vst.msk [vmem:[%s4 + $0x8] sm:$0xff] %vm316, %v313
      %319 = vst.msk [vmem:[%s4 + $0x10] sm:$0xff] %vm316, %v314
      %320 = vst.msk [vmem:[%s4 + $0x18] sm:$0xff] %vm316, %v315
      %s321 = scalar_lea.vmem %s4, 32
      %v322 = vld [vmem:[%s321] sm:$0xff]
      %v323 = vld [vmem:[%s321 + $0x8] sm:$0xff]
      %v324 = vld [vmem:[%s321 + $0x10] sm:$0xff]
      %v325 = vld [vmem:[%s321 + $0x18] sm:$0xff]
      %v326 = vmul.f32 %v207, %v207
      %v327 = vmul.f32 %v208, %v208
      %v328 = vmul.f32 %v209, %v209
      %v329 = vmul.f32 %v210, %v210
      %v330 = vmul.f32 %v261, %v261
      %v332 = vsel %vm267, %v326, 0
      %v335 = vsel %vm267, %v327, 0
      %v338 = vsel %vm267, %v328, 0
      %v341 = vsel %vm267, %v329, 0
      %v344 = vsel %vm267, %v330, 0
      %346 = vmatpush.xpose.msra.mxu0 0.0
      %347 = vmatpush.xpose.msra.mxu0 0.0
      %348 = vmatpush.xpose.msra.mxu0 0.0
      %349 = vmatpush.xpose.msra.mxu0 0.0
      %350 = vmatpush.xpose.msra.mxu0 0.0
      %351 = vmatpush.xpose.msra.mxu0 0.0
      %352 = vmatpush.xpose.msra.mxu0 0.0
      %353 = vmatpush.xpose.msra.mxu0 0.0
      %354 = vmatpush.xpose.msra.mxu0 0.0
      %355 = vmatpush.xpose.msra.mxu0 0.0
      %356 = vmatpush.xpose.msra.mxu0 0.0
      %357 = vmatpush.xpose.msra.mxu0 0.0
      %358 = vmatpush.xpose.msra.mxu0 0.0
      %359 = vmatpush.xpose.msra.mxu0 0.0
      %360 = vmatpush.xpose.msra.mxu0 0.0
      %361 = vmatpush.xpose.msra.mxu0 %v344
      %362 = vmatmul.f32.gmra.mxu0 %v332
      %v363 = vpop.f32.mrf.mxu0
      %v364 = vadd.f32 0.0, %v363
      %365 = vmatmul.f32.gmra.mxu0 %v335
      %v366 = vpop.f32.mrf.mxu0
      %v367 = vadd.f32 0.0, %v366
      %368 = vmatmul.f32.gmra.mxu0 %v338
      %v369 = vpop.f32.mrf.mxu0
      %v370 = vadd.f32 0.0, %v369
      %371 = vmatmul.f32.gmra.mxu0 %v341
      %v372 = vpop.f32.mrf.mxu0
      %v373 = vadd.f32 0.0, %v372
      %374 = vdwg.mxu0
      %v375 = vadd.f32 %v322, %v364
      %v376 = vadd.f32 %v323, %v367
      %v377 = vadd.f32 %v324, %v370
      %v378 = vadd.f32 %v325, %v373
      %379 = vst.msk [vmem:[%s321] sm:$0xff] %vm316, %v375
      %380 = vst.msk [vmem:[%s321 + $0x8] sm:$0xff] %vm316, %v376
      %381 = vst.msk [vmem:[%s321 + $0x10] sm:$0xff] %vm316, %v377
      %382 = vst.msk [vmem:[%s321 + $0x18] sm:$0xff] %vm316, %v378
      %p383 = scmp.lt.s32.totalorder %s16, 1
      %s384 = scalar_select %p383, %s16, 1
      %s385 = smul.addr %s384, 8
      %s386 = scalar_lea.vmem %s3, %s385
      // Predicated region
      $region37: #{rpp_forward.2} parent=31 // pred_check
        %p387 = pneg %p102
      $region38: #{rpp_forward.2} parent=31 // pred_check_branch
        %389 = sbr.rel (%p387) target = $region40
      $region39: #{rpp_forward.2} parent=31 // pred_region
        _
      $region40: #{rpp_forward.2} parent=31 // pred_fallthru
        _
      // Predicated region
      $region41: #{rpp_forward.2} parent=31 // pred_check
        %p390 = pneg %p123
      $region42: #{rpp_forward.2} parent=31 // pred_check_branch
        %392 = sbr.rel (%p390) target = $region44
      $region43: #{rpp_forward.2} parent=31 // pred_region
        _
      $region44: #{rpp_forward.2} parent=31 // pred_fallthru
        _
      // Predicated region
      $region45: #{rpp_forward.2} parent=31 // pred_check
        %p393 = pneg %p123
      $region46: #{rpp_forward.2} parent=31 // pred_check_branch
        %395 = sbr.rel (%p393) target = $region48
      $region47: #{rpp_forward.2} parent=31 // pred_region
        _
      $region48: #{rpp_forward.2} parent=31 // pred_fallthru
        _
    $region32: #{rpp_forward.2} parent=5 // pred_fallthru
      _
    %p396 = scmp.le.s32.totalorder 2, %s11
    // Predicated region
    $region49: #{rpp_forward.2} parent=5 // pred_check
      %p397 = pneg %p396
    $region50: #{rpp_forward.2} parent=5 // pred_check_branch
      %399 = sbr.rel (%p397) target = $region52
    $region51: #{rpp_forward.2} parent=5 // pred_region
      %s400 = ssub.s32 %s11, 2
      // Predicated region
      $region53: #{rpp_forward.2} parent=51 // pred_check
        %p401 = pneg %p108
      $region54: #{rpp_forward.2} parent=51 // pred_check_branch
        %403 = sbr.rel (%p401) target = $region56
      $region55: #{rpp_forward.2} parent=51 // pred_region
        %p404 = scmp.lt.s32.totalorder %s17, 1
        %s405 = scalar_select %p404, %s17, 1
        %s406 = smul.addr %s405, 8
        %s407 = scalar_lea.vmem %s3, %s406
      $region56: #{rpp_forward.2} parent=51 // pred_fallthru
        _
    $region52: #{rpp_forward.2} parent=5 // pred_fallthru
      _
  $region6: #{rpp_forward.2} parent=0 // loop_footer
    %s15 = sadd.s32 1, %s11
  $region7: #{rpp_forward.2} parent=0 // loop_footer_branch
    %10 = sbr.rel target = $region3
  $region8: #{rpp_forward.2} parent=0 // loop_exit
    _

</llo_original>
